<compile_context>
chip_gen: v5e
topology: v5e:2x2
jax: 0.10.0
libtpu: 0.0.40
codegen_flags: <defaults>
</compile_context>

<pallas_src>
import functools

import jax
import jax.numpy as jnp
from jax.experimental import pallas as pl
from jax.experimental.pallas import tpu as pltpu


def _sepconv_kernel(x_ref, mask_ref, dww_ref, dwb_ref, pww_ref, pwb_ref, o_ref,
                    *, H, W, Bn):
    """One block of Bn (channel-folded) images per grid step.

    x_ref    : (Bn, C, H*W)    flat NC(HW) input block (unpadded)
    mask_ref : (9, H*W)        precomputed 0/1 boundary masks per tap
    dww_ref  : (C, 9)          depthwise 3x3 taps, flattened as kh*3+kw
    dwb_ref  : (C, 1)          depthwise bias
    pww_ref  : (Co, C)         pointwise weights (block-diag if images folded)
    pwb_ref  : (Co, 1)         pointwise bias
    o_ref    : (Bn, Co, H*W)   flat NC(HW) output block
    """
    HW = H * W

    # Hoisted once per grid step (JAX does not CSE these).
    masks = mask_ref[...]                              # (9, HW), f32 0/1
    dww = dww_ref[...].astype(jnp.float32)             # (C, 9)
    dwb = dwb_ref[...].astype(jnp.float32)             # (C, 1)
    pww = pww_ref[...].astype(jnp.float32)             # (Co, C)
    pwb = pwb_ref[...].astype(jnp.float32)             # (Co, 1)
    cin = dww.shape[0]

    for b in range(Bn):                                # small static unroll
        x = x_ref[b].astype(jnp.float32)               # (C, HW)

        # Depthwise 3x3, stride 1, padding=1: center tap first (no roll/mask),
        # then 8 shifted taps via lane-roll (XLU) * boundary mask (VPU).
        acc = x * dww[:, 4:5]
        for kh in range(3):
            for kw in range(3):
                k = kh * 3 + kw
                if k == 4:
                    continue
                dh, dw = kh - 1, kw - 1
                s = dh * W + dw                        # flat-index shift
                # result[p] = x[p + s]; wrapped positions are zeroed by mask.
                v = pltpu.roll(x, shift=(-s) % HW, axis=1)
                acc = acc + (v * masks[k:k + 1]) * dww[:, k:k + 1]
        acc = acc + dwb                                # (C, HW)

        # Pointwise 1x1 conv: (Co, C) x (C, HW).
        if cin < 8:
            # Very tiny channel count: VPU broadcast-FMA.
            out = pww[:, 0:1] * acc[0:1, :]
            for ci in range(1, cin):
                out = out + pww[:, ci:ci + 1] * acc[ci:ci + 1, :]
        else:
            out = jnp.dot(pww, acc, preferred_element_type=jnp.float32)
        out = out + pwb                                # (Co, HW)

        o_ref[b] = out.astype(o_ref.dtype)


def _largest_divisor_leq(n, cap):
    cap = max(1, min(n, cap))
    for d in range(cap, 0, -1):
        if n % d == 0:
            return d
    return 1


def _build_masks(H, W):
    """0/1 masks (9, H*W): mask[k, p] == 1 iff tap k's neighbour of pixel p
    lies inside the image (fused padding=1)."""
    HW = H * W
    pos = jnp.arange(HW, dtype=jnp.int32)
    row = pos // W
    col = pos % W
    masks = []
    for kh in range(3):
        for kw in range(3):
            dh, dw = kh - 1, kw - 1
            m = jnp.ones((HW,), dtype=bool)
            if dh < 0:
                m = jnp.logical_and(m, row >= -dh)
            elif dh > 0:
                m = jnp.logical_and(m, row < H - dh)
            if dw < 0:
                m = jnp.logical_and(m, col >= -dw)
            elif dw > 0:
                m = jnp.logical_and(m, col < W - dw)
            masks.append(m)
    return jnp.stack(masks).astype(jnp.float32)        # (9, HW)


def separable_conv(x_nchw, dw_w, dw_b, pw_w, pw_b, *, target_block_bytes=2 << 20):
    """Forward pass of SeparableConv.

    x_nchw : (N, Cin, H, W)
    dw_w   : (Cin, 1, 3, 3)    depthwise Conv2d weight (groups=Cin)
    dw_b   : (Cin,)            depthwise bias
    pw_w   : (Cout, Cin, 1, 1) pointwise Conv2d weight
    pw_b   : (Cout,)           pointwise bias
    returns (N, Cout, H, W)
    """
    N, Cin, H, W = x_nchw.shape
    Cout = pw_w.shape[0]
    HW = H * W
    itemsize = jnp.dtype(x_nchw.dtype).itemsize

    # --- Fold G images into the channel axis to fill f32 sublanes (8). ------
    # Free contiguous reshape; depthwise weights tiled, pointwise block-diag.
    want_fold = max(1, 8 // max(Cin, 1))
    G = _largest_divisor_leq(N, want_fold)
    Nf = N // G
    Cf_in = G * Cin
    Cf_out = G * Cout

    x_flat = x_nchw.reshape(Nf, Cf_in, HW)
    dww = jnp.tile(dw_w.reshape(Cin, 9), (G, 1))                 # (Cf_in, 9)
    dwb = jnp.tile(dw_b.reshape(Cin, 1), (G, 1))                 # (Cf_in, 1)
    pww2 = pw_w.reshape(Cout, Cin)
    pww = jnp.kron(jnp.eye(G, dtype=pww2.dtype), pww2)           # (Cf_out, Cf_in)
    pwb = jnp.tile(pw_b.reshape(Cout, 1), (G, 1))                # (Cf_out, 1)
    masks = _build_masks(H, W)                                   # (9, HW)

    # --- Batch blocking: Bn folded images per grid step. ---------------------
    bytes_per_image = (Cf_in + Cf_out) * HW * itemsize
    bn_bytes_cap = max(1, int(target_block_bytes // max(bytes_per_image, 1)))
    bn_cap = max(1, min(bn_bytes_cap, 16, -(-Nf // 8)))  # keep >=~8 grid steps
    Bn = _largest_divisor_leq(Nf, bn_cap)
    grid = (Nf // Bn,)

    block_bytes = Bn * bytes_per_image
    vmem_limit = int(min(64 << 20, max(32 << 20, 6 * block_bytes + (8 << 20))))

    kernel = functools.partial(_sepconv_kernel, H=H, W=W, Bn=Bn)

    out_flat = pl.pallas_call(
        kernel,
        out_shape=jax.ShapeDtypeStruct((Nf, Cf_out, HW), x_nchw.dtype),
        grid_spec=pltpu.PrefetchScalarGridSpec(
            num_scalar_prefetch=0,
            grid=grid,
            in_specs=[
                pl.BlockSpec((Bn, Cf_in, HW), lambda n: (n, 0, 0)),
                pl.BlockSpec((9, HW), lambda n: (0, 0)),
                pl.BlockSpec((Cf_in, 9), lambda n: (0, 0)),
                pl.BlockSpec((Cf_in, 1), lambda n: (0, 0)),
                pl.BlockSpec((Cf_out, Cf_in), lambda n: (0, 0)),
                pl.BlockSpec((Cf_out, 1), lambda n: (0, 0)),
            ],
            out_specs=pl.BlockSpec((Bn, Cf_out, HW), lambda n: (n, 0, 0)),
        ),
        compiler_params=pltpu.CompilerParams(
            dimension_semantics=("parallel",),
            vmem_limit_bytes=vmem_limit),
    )(x_flat, masks, dww, dwb, pww, pwb)

    return out_flat.reshape(N, Cout, H, W)


def _init_params(key, in_channels, out_channels):
    """Deterministic Xavier-normal-style init matching the module shapes."""
    k1, k2, k3, k4 = jax.random.split(key, 4)

    # depthwise weight (Cin, 1, 3, 3): fan_in = 1*9, fan_out = 1*9
    dw_std = (2.0 / (9 + 9)) ** 0.5
    dw_w = dw_std * jax.random.normal(k1, (in_channels, 1, 3, 3), jnp.float32)
    dw_b = 0.1 * jax.random.normal(k2, (in_channels,), jnp.float32)

    # pointwise weight (Cout, Cin, 1, 1): fan_in = Cin, fan_out = Cout
    pw_std = (2.0 / (in_channels + out_channels)) ** 0.5
    pw_w = pw_std * jax.random.normal(k3, (out_channels, in_channels, 1, 1),
                                      jnp.float32)
    pw_b = 0.1 * jax.random.normal(k4, (out_channels,), jnp.float32)

    return dw_w, dw_b, pw_w, pw_b


def _reference(x, dw_w, dw_b, pw_w, pw_b):
    """Pure-JAX reference matching nn.Conv2d semantics."""
    Cin = x.shape[1]
    dn = ("NCHW", "OIHW", "NCHW")
    y = jax.lax.conv_general_dilated(
        x, dw_w, window_strides=(1, 1), padding=((1, 1), (1, 1)),
        dimension_numbers=dn, feature_group_count=Cin)
    y = y + dw_b[None, :, None, None]
    z = jax.lax.conv_general_dilated(
        y, pw_w, window_strides=(1, 1), padding="VALID", dimension_numbers=dn)
    return z + pw_b[None, :, None, None]


if __name__ == "__main__":
    key = jax.random.PRNGKey(0)
    kx, kp = jax.random.split(key)

    N, Cin, H, W = 2, 4, 16, 16
    Cout = 8

    x = jax.random.normal(kx, (N, Cin, H, W), jnp.float32)
    dw_w, dw_b, pw_w, pw_b = _init_params(kp, Cin, Cout)

    out = separable_conv(x, dw_w, dw_b, pw_w, pw_b)
    out = jax.block_until_ready(out)
    assert out.shape == (N, Cout, H, W), out.shape

    ref = _reference(x, dw_w, dw_b, pw_w, pw_b)
    err = float(jnp.max(jnp.abs(out - ref)))
    assert jnp.allclose(out, ref, atol=1e-4, rtol=1e-4), f"max abs err {err}"

    print("KERNEL_OK")
</pallas_src>

<mosaic_0001>
module attributes {stable_mosaic.version = 11 : i64} {
  func.func @_sepconv_kernel(%arg0: i32, %arg1: memref<1x8x256xf32, #tpu.memory_space<vmem>>, %arg2: memref<9x256xf32, #tpu.memory_space<vmem>>, %arg3: memref<8x9xf32, #tpu.memory_space<vmem>>, %arg4: memref<8x1xf32, #tpu.memory_space<vmem>>, %arg5: memref<16x8xf32, #tpu.memory_space<vmem>>, %arg6: memref<16x1xf32, #tpu.memory_space<vmem>>, %arg7: memref<1x16x256xf32, #tpu.memory_space<vmem>>) attributes {dimension_semantics = [#tpu.dimension_semantics<parallel>], iteration_bounds = array<i64: 1>, scalar_prefetch = 0 : i64, scratch_operands = 0 : i64, tpu.core_type = #tpu.core_type<tc>, window_params = [{transform_indices = @transform_0, window_bounds = array<i64: 1, 8, 256>}, {pipeline_mode = #tpu.pipeline_mode<synchronous>, transform_indices = @transform_1, window_bounds = array<i64: 9, 256>}, {pipeline_mode = #tpu.pipeline_mode<synchronous>, transform_indices = @transform_2, window_bounds = array<i64: 8, 9>}, {pipeline_mode = #tpu.pipeline_mode<synchronous>, transform_indices = @transform_3, window_bounds = array<i64: 8, 1>}, {pipeline_mode = #tpu.pipeline_mode<synchronous>, transform_indices = @transform_4, window_bounds = array<i64: 16, 8>}, {pipeline_mode = #tpu.pipeline_mode<synchronous>, transform_indices = @transform_5, window_bounds = array<i64: 16, 1>}, {transform_indices = @transform_6, window_bounds = array<i64: 1, 16, 256>}]} {
    %c0 = arith.constant 0 : index
    %c0_0 = arith.constant 0 : index
    %0 = vector.load %arg2[%c0, %c0_0] : memref<9x256xf32, #tpu.memory_space<vmem>>, vector<9x256xf32>
    %c0_1 = arith.constant 0 : index
    %c0_2 = arith.constant 0 : index
    %1 = vector.load %arg3[%c0_1, %c0_2] : memref<8x9xf32, #tpu.memory_space<vmem>>, vector<8x9xf32>
    %c0_3 = arith.constant 0 : index
    %c0_4 = arith.constant 0 : index
    %2 = vector.load %arg4[%c0_3, %c0_4] : memref<8x1xf32, #tpu.memory_space<vmem>>, vector<8x1xf32>
    %c0_5 = arith.constant 0 : index
    %c0_6 = arith.constant 0 : index
    %3 = vector.load %arg5[%c0_5, %c0_6] : memref<16x8xf32, #tpu.memory_space<vmem>>, vector<16x8xf32>
    %c0_7 = arith.constant 0 : index
    %c0_8 = arith.constant 0 : index
    %4 = vector.load %arg6[%c0_7, %c0_8] : memref<16x1xf32, #tpu.memory_space<vmem>>, vector<16x1xf32>
    %c0_9 = arith.constant 0 : index
    %c0_10 = arith.constant 0 : index
    %c0_11 = arith.constant 0 : index
    %5 = vector.load %arg1[%c0_9, %c0_10, %c0_11] : memref<1x8x256xf32, #tpu.memory_space<vmem>>, vector<1x8x256xf32>
    %6 = vector.shape_cast %5 : vector<1x8x256xf32> to vector<8x256xf32>
    %7 = vector.extract_strided_slice %1 {offsets = [0, 4], sizes = [8, 1], strides = [1, 1]} : vector<8x9xf32> to vector<8x1xf32>
    %8 = vector.broadcast %7 : vector<8x1xf32> to vector<8x256xf32>
    %9 = arith.mulf %6, %8 : vector<8x256xf32>
    %c17_i32 = arith.constant 17 : i32
    %10 = tpu.dynamic_rotate %6 by %c17_i32 dim 1 : vector<8x256xf32>, i32 -> vector<8x256xf32>
    %11 = vector.extract_strided_slice %0 {offsets = [0, 0], sizes = [1, 256], strides = [1, 1]} : vector<9x256xf32> to vector<1x256xf32>
    %12 = vector.broadcast %11 : vector<1x256xf32> to vector<8x256xf32>
    %13 = arith.mulf %10, %12 : vector<8x256xf32>
    %14 = vector.extract_strided_slice %1 {offsets = [0, 0], sizes = [8, 1], strides = [1, 1]} : vector<8x9xf32> to vector<8x1xf32>
    %15 = vector.broadcast %14 : vector<8x1xf32> to vector<8x256xf32>
    %16 = arith.mulf %13, %15 : vector<8x256xf32>
    %17 = arith.addf %9, %16 : vector<8x256xf32>
    %c16_i32 = arith.constant 16 : i32
    %18 = tpu.dynamic_rotate %6 by %c16_i32 dim 1 : vector<8x256xf32>, i32 -> vector<8x256xf32>
    %19 = vector.extract_strided_slice %0 {offsets = [1, 0], sizes = [1, 256], strides = [1, 1]} : vector<9x256xf32> to vector<1x256xf32>
    %20 = vector.broadcast %19 : vector<1x256xf32> to vector<8x256xf32>
    %21 = arith.mulf %18, %20 : vector<8x256xf32>
    %22 = vector.extract_strided_slice %1 {offsets = [0, 1], sizes = [8, 1], strides = [1, 1]} : vector<8x9xf32> to vector<8x1xf32>
    %23 = vector.broadcast %22 : vector<8x1xf32> to vector<8x256xf32>
    %24 = arith.mulf %21, %23 : vector<8x256xf32>
    %25 = arith.addf %17, %24 : vector<8x256xf32>
    %c15_i32 = arith.constant 15 : i32
    %26 = tpu.dynamic_rotate %6 by %c15_i32 dim 1 : vector<8x256xf32>, i32 -> vector<8x256xf32>
    %27 = vector.extract_strided_slice %0 {offsets = [2, 0], sizes = [1, 256], strides = [1, 1]} : vector<9x256xf32> to vector<1x256xf32>
    %28 = vector.broadcast %27 : vector<1x256xf32> to vector<8x256xf32>
    %29 = arith.mulf %26, %28 : vector<8x256xf32>
    %30 = vector.extract_strided_slice %1 {offsets = [0, 2], sizes = [8, 1], strides = [1, 1]} : vector<8x9xf32> to vector<8x1xf32>
    %31 = vector.broadcast %30 : vector<8x1xf32> to vector<8x256xf32>
    %32 = arith.mulf %29, %31 : vector<8x256xf32>
    %33 = arith.addf %25, %32 : vector<8x256xf32>
    %c1_i32 = arith.constant 1 : i32
    %34 = tpu.dynamic_rotate %6 by %c1_i32 dim 1 : vector<8x256xf32>, i32 -> vector<8x256xf32>
    %35 = vector.extract_strided_slice %0 {offsets = [3, 0], sizes = [1, 256], strides = [1, 1]} : vector<9x256xf32> to vector<1x256xf32>
    %36 = vector.broadcast %35 : vector<1x256xf32> to vector<8x256xf32>
    %37 = arith.mulf %34, %36 : vector<8x256xf32>
    %38 = vector.extract_strided_slice %1 {offsets = [0, 3], sizes = [8, 1], strides = [1, 1]} : vector<8x9xf32> to vector<8x1xf32>
    %39 = vector.broadcast %38 : vector<8x1xf32> to vector<8x256xf32>
    %40 = arith.mulf %37, %39 : vector<8x256xf32>
    %41 = arith.addf %33, %40 : vector<8x256xf32>
    %c255_i32 = arith.constant 255 : i32
    %42 = tpu.dynamic_rotate %6 by %c255_i32 dim 1 : vector<8x256xf32>, i32 -> vector<8x256xf32>
    %43 = vector.extract_strided_slice %0 {offsets = [5, 0], sizes = [1, 256], strides = [1, 1]} : vector<9x256xf32> to vector<1x256xf32>
    %44 = vector.broadcast %43 : vector<1x256xf32> to vector<8x256xf32>
    %45 = arith.mulf %42, %44 : vector<8x256xf32>
    %46 = vector.extract_strided_slice %1 {offsets = [0, 5], sizes = [8, 1], strides = [1, 1]} : vector<8x9xf32> to vector<8x1xf32>
    %47 = vector.broadcast %46 : vector<8x1xf32> to vector<8x256xf32>
    %48 = arith.mulf %45, %47 : vector<8x256xf32>
    %49 = arith.addf %41, %48 : vector<8x256xf32>
    %c241_i32 = arith.constant 241 : i32
    %50 = tpu.dynamic_rotate %6 by %c241_i32 dim 1 : vector<8x256xf32>, i32 -> vector<8x256xf32>
    %51 = vector.extract_strided_slice %0 {offsets = [6, 0], sizes = [1, 256], strides = [1, 1]} : vector<9x256xf32> to vector<1x256xf32>
    %52 = vector.broadcast %51 : vector<1x256xf32> to vector<8x256xf32>
    %53 = arith.mulf %50, %52 : vector<8x256xf32>
    %54 = vector.extract_strided_slice %1 {offsets = [0, 6], sizes = [8, 1], strides = [1, 1]} : vector<8x9xf32> to vector<8x1xf32>
    %55 = vector.broadcast %54 : vector<8x1xf32> to vector<8x256xf32>
    %56 = arith.mulf %53, %55 : vector<8x256xf32>
    %57 = arith.addf %49, %56 : vector<8x256xf32>
    %c240_i32 = arith.constant 240 : i32
    %58 = tpu.dynamic_rotate %6 by %c240_i32 dim 1 : vector<8x256xf32>, i32 -> vector<8x256xf32>
    %59 = vector.extract_strided_slice %0 {offsets = [7, 0], sizes = [1, 256], strides = [1, 1]} : vector<9x256xf32> to vector<1x256xf32>
    %60 = vector.broadcast %59 : vector<1x256xf32> to vector<8x256xf32>
    %61 = arith.mulf %58, %60 : vector<8x256xf32>
    %62 = vector.extract_strided_slice %1 {offsets = [0, 7], sizes = [8, 1], strides = [1, 1]} : vector<8x9xf32> to vector<8x1xf32>
    %63 = vector.broadcast %62 : vector<8x1xf32> to vector<8x256xf32>
    %64 = arith.mulf %61, %63 : vector<8x256xf32>
    %65 = arith.addf %57, %64 : vector<8x256xf32>
    %c239_i32 = arith.constant 239 : i32
    %66 = tpu.dynamic_rotate %6 by %c239_i32 dim 1 : vector<8x256xf32>, i32 -> vector<8x256xf32>
    %67 = vector.extract_strided_slice %0 {offsets = [8, 0], sizes = [1, 256], strides = [1, 1]} : vector<9x256xf32> to vector<1x256xf32>
    %68 = vector.broadcast %67 : vector<1x256xf32> to vector<8x256xf32>
    %69 = arith.mulf %66, %68 : vector<8x256xf32>
    %70 = vector.extract_strided_slice %1 {offsets = [0, 8], sizes = [8, 1], strides = [1, 1]} : vector<8x9xf32> to vector<8x1xf32>
    %71 = vector.broadcast %70 : vector<8x1xf32> to vector<8x256xf32>
    %72 = arith.mulf %69, %71 : vector<8x256xf32>
    %73 = arith.addf %65, %72 : vector<8x256xf32>
    %74 = vector.broadcast %2 : vector<8x1xf32> to vector<8x256xf32>
    %75 = arith.addf %73, %74 : vector<8x256xf32>
    %cst = arith.constant dense<0.000000e+00> : vector<16x256xf32>
    %76 = tpu.matmul %3, %75, %cst {dimension_numbers = #tpu.dot_dimension_numbers<[1], [0], [0], [1], [0, 0, 1, 1], [], []>} : vector<16x8xf32>, vector<8x256xf32>, vector<16x256xf32> -> vector<16x256xf32>
    %77 = vector.broadcast %4 : vector<16x1xf32> to vector<16x256xf32>
    %78 = arith.addf %76, %77 : vector<16x256xf32>
    %c0_12 = arith.constant 0 : index
    %c0_13 = arith.constant 0 : index
    %c0_14 = arith.constant 0 : index
    %79 = vector.load %arg7[%c0_12, %c0_13, %c0_14] : memref<1x16x256xf32, #tpu.memory_space<vmem>>, vector<1x16x256xf32>
    %80 = vector.shape_cast %79 : vector<1x16x256xf32> to vector<16x256xf32>
    %81 = vector.shape_cast %78 : vector<16x256xf32> to vector<1x16x256xf32>
    tpu.vector_store %arg7[%c0_12, %c0_13, %c0_14], %81 {strides = array<i32>} : memref<1x16x256xf32, #tpu.memory_space<vmem>>, vector<1x16x256xf32>,
    return
  }
  func.func @transform_0(%arg0: i32) -> (i32, i32, i32) {
    %c0_i32 = arith.constant 0 : i32
    %c0_i32_0 = arith.constant 0 : i32
    %c0_i32_1 = arith.constant 0 : i32
    return %arg0, %c0_i32, %c0_i32_0 : i32, i32, i32
  }
  func.func @transform_1(%arg0: i32) -> (i32, i32) {
    %c0_i32 = arith.constant 0 : i32
    %c0_i32_0 = arith.constant 0 : i32
    %c0_i32_1 = arith.constant 0 : i32
    return %c0_i32, %c0_i32_0 : i32, i32
  }
  func.func @transform_2(%arg0: i32) -> (i32, i32) {
    %c0_i32 = arith.constant 0 : i32
    %c0_i32_0 = arith.constant 0 : i32
    %c0_i32_1 = arith.constant 0 : i32
    return %c0_i32, %c0_i32_0 : i32, i32
  }
  func.func @transform_3(%arg0: i32) -> (i32, i32) {
    %c0_i32 = arith.constant 0 : i32
    %c0_i32_0 = arith.constant 0 : i32
    %c0_i32_1 = arith.constant 0 : i32
    return %c0_i32, %c0_i32_0 : i32, i32
  }
  func.func @transform_4(%arg0: i32) -> (i32, i32) {
    %c0_i32 = arith.constant 0 : i32
    %c0_i32_0 = arith.constant 0 : i32
    %c0_i32_1 = arith.constant 0 : i32
    return %c0_i32, %c0_i32_0 : i32, i32
  }
  func.func @transform_5(%arg0: i32) -> (i32, i32) {
    %c0_i32 = arith.constant 0 : i32
    %c0_i32_0 = arith.constant 0 : i32
    %c0_i32_1 = arith.constant 0 : i32
    return %c0_i32, %c0_i32_0 : i32, i32
  }
  func.func @transform_6(%arg0: i32) -> (i32, i32, i32) {
    %c0_i32 = arith.constant 0 : i32
    %c0_i32_0 = arith.constant 0 : i32
    %c0_i32_1 = arith.constant 0 : i32
    return %arg0, %c0_i32, %c0_i32_0 : i32, i32, i32
  }
}

</mosaic_0001>

<llo_original>
// kernel: tpu_custom_call.1
$region0: #{tpu_custom_call.1}
  #allocation0 [shape = 'u32[]', space=smem, size = 0x4, offset = 0x4, fixed_abs, tag = 'smem constant byte address 0x4 - core index']
  #allocation1 [shape = 'u32[72,128]{1,0:T(1,128)}', space=vmem, size = 0x9000, scoped, tag = 'internal scratch']
  %s0 = inlined_call_operand.hbm [shape: f32[1,8,256], index: 0, kind: input, shape index: {}]
  %s1 = inlined_call_operand.vmem [shape: f32[9,256], index: 1, kind: input, shape index: {}]
  %s2 = inlined_call_operand.vmem [shape: f32[8,9], index: 2, kind: input, shape index: {}]
  %s3 = inlined_call_operand.vmem [shape: f32[8,1], index: 3, kind: input, shape index: {}]
  %s4 = inlined_call_operand.vmem [shape: f32[16,8], index: 4, kind: input, shape index: {}]
  %s5 = inlined_call_operand.vmem [shape: f32[16,1], index: 5, kind: input, shape index: {}]
  %s6 = inlined_call_operand.hbm [shape: f32[1,16,256], index: 6, kind: output, shape index: {}]
  %s7 = sld [smem:[#allocation0]]
  $region38: #{tpu_custom_call.1} parent=0
    _
  %s9 = ssub.s32 1, %s7
  %s10 = scalar_select 0, %s9, %s7
  $region1: #{tpu_custom_call.1} parent=0
    #allocation2 [shape = 'u8[8192]{0}', space=vmem, size = 0x2000, scoped, tag = 'input window, operand 0, single buffered']
    #allocation3 [shape = 's32[1]{0}', space=sflag, size = 0x4, scoped, tag = 'scoped memory for tpu_custom_call.1']
    #allocation4 [shape = 's32[1]{0}', space=sflag, size = 0x4, scoped, tag = 'scoped memory for tpu_custom_call.1']
    #allocation5 [shape = 'u8[16384]{0}', space=vmem, size = 0x4000, scoped, tag = 'output window, operand 0, single buffered']
    %11 = vsyncpa [#allocation3], 0
    %12 = vsyncpa [#allocation4], 0
    // Predicated region
    $region2: #{tpu_custom_call.1} parent=1 // pred_check
      _
    $region3: #{tpu_custom_call.1} parent=1 // pred_check_branch
      %14 = sbr.rel (0) target = $region5
    $region4: #{tpu_custom_call.1} parent=1 // pred_region
      %16 = vsyncadd [#allocation3], 0
      %s18 = sshll.u32 %s0, 4
      %s19 = int_to_ptr.hbm [resolvable:$true] %s18
      %s20 = sshll.u32 [#allocation2], 4
      %s21 = int_to_ptr.vmem [resolvable:$true] %s20
      %23 = dma.hbm_to_vmem [thread:$0]  %s19, 256, %s21, [#allocation3]
    $region5: #{tpu_custom_call.1} parent=1 // pred_fallthru
      _
    // Predicated region
    $region6: #{tpu_custom_call.1} parent=1 // pred_check
      _
    $region7: #{tpu_custom_call.1} parent=1 // pred_check_branch
      %25 = sbr.rel (0) target = $region9
    $region8: #{tpu_custom_call.1} parent=1 // pred_region
      _
    $region9: #{tpu_custom_call.1} parent=1 // pred_fallthru
      _
    // Predicated region
    $region10: #{tpu_custom_call.1} parent=1 // pred_check
      _
    $region11: #{tpu_custom_call.1} parent=1 // pred_check_branch
      %27 = sbr.rel (0) target = $region13
    $region12: #{tpu_custom_call.1} parent=1 // pred_region
      _
    $region13: #{tpu_custom_call.1} parent=1 // pred_fallthru
      _
    // Predicated region
    $region14: #{tpu_custom_call.1} parent=1 // pred_check
      _
    $region15: #{tpu_custom_call.1} parent=1 // pred_check_branch
      %29 = sbr.rel (0) target = $region17
    $region16: #{tpu_custom_call.1} parent=1 // pred_region
      _
    $region17: #{tpu_custom_call.1} parent=1 // pred_fallthru
      _
    // Predicated region
    $region18: #{tpu_custom_call.1} parent=1 // pred_check
      _
    $region19: #{tpu_custom_call.1} parent=1 // pred_check_branch
      %31 = sbr.rel (0) target = $region21
    $region20: #{tpu_custom_call.1} parent=1 // pred_region
      _
    $region21: #{tpu_custom_call.1} parent=1 // pred_fallthru
      _
    // Predicated region
    $region22: #{tpu_custom_call.1} parent=1 // pred_check
      _
    $region23: #{tpu_custom_call.1} parent=1 // pred_check_branch
      %33 = sbr.rel (0) target = $region25
    $region24: #{tpu_custom_call.1} parent=1 // pred_region
      _
    $region25: #{tpu_custom_call.1} parent=1 // pred_fallthru
      _
    // Predicated region
    $region26: #{tpu_custom_call.1} parent=1 // pred_check
      _
    $region27: #{tpu_custom_call.1} parent=1 // pred_check_branch
      %35 = sbr.rel (0) target = $region29
    $region28: #{tpu_custom_call.1} parent=1 // pred_region
      %37 = dma.done [#allocation3], 256
    $region29: #{tpu_custom_call.1} parent=1 // pred_fallthru
      _
    %v38 = vld [vmem:[%s1] sm:$0xff]
    %v39 = vld [vmem:[%s1 + $0x8] sm:$0xff]
    %v40 = vld [vmem:[%s1 + $0x10] sm:$0x1]
    %v41 = vld [vmem:[%s1 + $0x18] sm:$0x1]
    %v42 = vld [vmem:[%s2] sm:$0xff]
    %v43 = vld [vmem:[%s3] sm:$0xff]
    %v44 = vld [vmem:[%s4] sm:$0xff]
    %v45 = vld [vmem:[%s4 + $0x8] sm:$0xff]
    %v46 = vld [vmem:[%s5] sm:$0xff]
    %v47 = vld [vmem:[%s5 + $0x8] sm:$0xff]
    %v48 = vld [vmem:[#allocation2] sm:$0xff]
    %v49 = vld [vmem:[#allocation2 + $0x8] sm:$0xff]
    %51 = vset.pattern.permute.xlu0 4
    %52 = vperm.xlu0 %51, %v42
    %v53 = vpop.permute.xlu0 %52
    %v55 = vmul.f32 %v48, %v53
    %v56 = vmul.f32 %v49, %v53
    %57 = vrot.lane.b32.xlu0 %v48, 17
    %v58 = vpop.permute.xlu0 %57
    %59 = vrot.lane.b32.xlu0 %v49, 17
    %v60 = vpop.permute.xlu0 %59
    %v61 = vlaneseq
    %v62 = vand.u32 %v61, 127
    %vm63 = vcmp.lt.s32.totalorder %v62, 17
    %v64 = vsel %vm63, %v58, %v60
    %v65 = vsel %vm63, %v60, %v58
    %v66 = vperm.slane %v38, 0
    %v67 = vperm.slane %v39, 0
    %v68 = vmul.f32 %v65, %v66
    %v69 = vmul.f32 %v64, %v67
    %70 = vset.pattern.permute.xlu0 0
    %71 = vperm.xlu0 %70, %v42
    %v72 = vpop.permute.xlu0 %71
    %v74 = vmul.f32 %v68, %v72
    %v75 = vmul.f32 %v69, %v72
    %v76 = vadd.f32 %v55, %v74
    %v77 = vadd.f32 %v56, %v75
    %78 = vrot.lane.b32.xlu0 %v48, 16
    %v79 = vpop.permute.xlu0 %78
    %80 = vrot.lane.b32.xlu0 %v49, 16
    %v81 = vpop.permute.xlu0 %80
    %vm82 = vcmp.lt.s32.totalorder %v62, 16
    %v83 = vsel %vm82, %v79, %v81
    %v84 = vsel %vm82, %v81, %v79
    %v85 = vperm.slane %v38, 1
    %v86 = vperm.slane %v39, 1
    %v87 = vmul.f32 %v84, %v85
    %v88 = vmul.f32 %v83, %v86
    %89 = vset.pattern.permute.xlu0 1
    %90 = vperm.xlu0 %89, %v42
    %v91 = vpop.permute.xlu0 %90
    %v93 = vmul.f32 %v87, %v91
    %v94 = vmul.f32 %v88, %v91
    %v95 = vadd.f32 %v76, %v93
    %v96 = vadd.f32 %v77, %v94
    %97 = vrot.lane.b32.xlu0 %v48, 15
    %v98 = vpop.permute.xlu0 %97
    %99 = vrot.lane.b32.xlu0 %v49, 15
    %v100 = vpop.permute.xlu0 %99
    %vm101 = vcmp.lt.s32.totalorder %v62, 15
    %v102 = vsel %vm101, %v98, %v100
    %v103 = vsel %vm101, %v100, %v98
    %v104 = vperm.slane %v38, 2
    %v105 = vperm.slane %v39, 2
    %v106 = vmul.f32 %v103, %v104
    %v107 = vmul.f32 %v102, %v105
    %108 = vset.pattern.permute.xlu0 2
    %109 = vperm.xlu0 %108, %v42
    %v110 = vpop.permute.xlu0 %109
    %v112 = vmul.f32 %v106, %v110
    %v113 = vmul.f32 %v107, %v110
    %v114 = vadd.f32 %v95, %v112
    %v115 = vadd.f32 %v96, %v113
    %116 = vrot.lane.b32.xlu0 %v48, 1
    %v117 = vpop.permute.xlu0 %116
    %118 = vrot.lane.b32.xlu0 %v49, 1
    %v119 = vpop.permute.xlu0 %118
    %vm120 = vcmp.lt.s32.totalorder %v62, 1
    %v121 = vsel %vm120, %v117, %v119
    %v122 = vsel %vm120, %v119, %v117
    %v123 = vperm.slane %v38, 3
    %v124 = vperm.slane %v39, 3
    %v125 = vmul.f32 %v122, %v123
    %v126 = vmul.f32 %v121, %v124
    %127 = vset.pattern.permute.xlu0 3
    %128 = vperm.xlu0 %127, %v42
    %v129 = vpop.permute.xlu0 %128
    %v131 = vmul.f32 %v125, %v129
    %v132 = vmul.f32 %v126, %v129
    %v133 = vadd.f32 %v114, %v131
    %v134 = vadd.f32 %v115, %v132
    %135 = vrot.lane.b32.xlu0 %v48, 127
    %v136 = vpop.permute.xlu0 %135
    %137 = vrot.lane.b32.xlu0 %v49, 127
    %v138 = vpop.permute.xlu0 %137
    %vm139 = vcmp.lt.s32.totalorder %v62, 127
    %v140 = vsel %vm139, %v136, %v138
    %v141 = vsel %vm139, %v138, %v136
    %v142 = vperm.slane %v38, 5
    %v143 = vperm.slane %v39, 5
    %v144 = vmul.f32 %v140, %v142
    %v145 = vmul.f32 %v141, %v143
    %146 = vset.pattern.permute.xlu0 5
    %147 = vperm.xlu0 %146, %v42
    %v148 = vpop.permute.xlu0 %147
    %v150 = vmul.f32 %v144, %v148
    %v151 = vmul.f32 %v145, %v148
    %v152 = vadd.f32 %v133, %v150
    %v153 = vadd.f32 %v134, %v151
    %154 = vrot.lane.b32.xlu0 %v48, 113
    %v155 = vpop.permute.xlu0 %154
    %156 = vrot.lane.b32.xlu0 %v49, 113
    %v157 = vpop.permute.xlu0 %156
    %vm158 = vcmp.lt.s32.totalorder %v62, 113
    %v159 = vsel %vm158, %v155, %v157
    %v160 = vsel %vm158, %v157, %v155
    %v161 = vperm.slane %v38, 6
    %v162 = vperm.slane %v39, 6
    %v163 = vmul.f32 %v159, %v161
    %v164 = vmul.f32 %v160, %v162
    %165 = vset.pattern.permute.xlu0 6
    %166 = vperm.xlu0 %165, %v42
    %v167 = vpop.permute.xlu0 %166
    %v169 = vmul.f32 %v163, %v167
    %v170 = vmul.f32 %v164, %v167
    %v171 = vadd.f32 %v152, %v169
    %v172 = vadd.f32 %v153, %v170
    %173 = vrot.lane.b32.xlu0 %v48, 112
    %v174 = vpop.permute.xlu0 %173
    %175 = vrot.lane.b32.xlu0 %v49, 112
    %v176 = vpop.permute.xlu0 %175
    %vm177 = vcmp.lt.s32.totalorder %v62, 112
    %v178 = vsel %vm177, %v174, %v176
    %v179 = vsel %vm177, %v176, %v174
    %v180 = vperm.slane %v38, 7
    %v181 = vperm.slane %v39, 7
    %v182 = vmul.f32 %v178, %v180
    %v183 = vmul.f32 %v179, %v181
    %184 = vset.pattern.permute.xlu0 7
    %185 = vperm.xlu0 %184, %v42
    %v186 = vpop.permute.xlu0 %185
    %v188 = vmul.f32 %v182, %v186
    %v189 = vmul.f32 %v183, %v186
    %v190 = vadd.f32 %v171, %v188
    %v191 = vadd.f32 %v172, %v189
    %192 = vrot.lane.b32.xlu0 %v48, 111
    %v193 = vpop.permute.xlu0 %192
    %194 = vrot.lane.b32.xlu0 %v49, 111
    %v195 = vpop.permute.xlu0 %194
    %vm196 = vcmp.lt.s32.totalorder %v62, 111
    %v197 = vsel %vm196, %v193, %v195
    %v198 = vsel %vm196, %v195, %v193
    %v199 = vperm.slane %v40, 0
    %v200 = vperm.slane %v41, 0
    %v201 = vmul.f32 %v197, %v199
    %v202 = vmul.f32 %v198, %v200
    %203 = vset.pattern.permute.xlu0 8
    %204 = vperm.xlu0 %203, %v42
    %v205 = vpop.permute.xlu0 %204
    %v207 = vmul.f32 %v201, %v205
    %v208 = vmul.f32 %v202, %v205
    %v209 = vadd.f32 %v190, %v207
    %v210 = vadd.f32 %v191, %v208
    %212 = vset.pattern.permute.xlu0 0
    %213 = vperm.xlu0 %212, %v43
    %v214 = vpop.permute.xlu0 %213
    %v216 = vadd.f32 %v209, %v214
    %v217 = vadd.f32 %v210, %v214
    %219 = vset.pattern.permute.xlu0 0
    %220 = vperm.xlu0 %219, %v46
    %v221 = vpop.permute.xlu0 %220
    %224 = vset.pattern.permute.xlu0 0
    %225 = vperm.xlu0 %224, %v47
    %v226 = vpop.permute.xlu0 %225
    %vm228 = vcmask 64512
    %v230 = vsel %vm228, %v44, 0
    %v233 = vsel %vm228, %v45, 0
    %235 = vmatpush.msra.mxu0 0.0
    %236 = vmatpush.msra.mxu0 0.0
    %237 = vmatpush.msra.mxu0 0.0
    %238 = vmatpush.msra.mxu0 0.0
    %239 = vmatpush.msra.mxu0 0.0
    %240 = vmatpush.msra.mxu0 0.0
    %241 = vmatpush.msra.mxu0 0.0
    %242 = vmatpush.msra.mxu0 0.0
    %243 = vmatpush.msra.mxu0 0.0
    %244 = vmatpush.msra.mxu0 0.0
    %245 = vmatpush.msra.mxu0 0.0
    %246 = vmatpush.msra.mxu0 0.0
    %247 = vmatpush.msra.mxu0 0.0
    %248 = vmatpush.msra.mxu0 0.0
    %249 = vmatpush.msra.mxu0 0.0
    %250 = vmatpush.msra.mxu0 %v216
    %251 = vmatmul.f32.gmra.mxu0 %v230
    %v252 = vpop.f32.mrf.mxu0
    %v253 = vadd.f32 %v221, %v252
    %254 = vmatmul.f32.gmra.mxu0 %v233
    %v255 = vpop.f32.mrf.mxu0
    %v256 = vadd.f32 %v226, %v255
    %257 = vdwg.mxu0
    %258 = vmatpush.msra.mxu0 0.0
    %259 = vmatpush.msra.mxu0 0.0
    %260 = vmatpush.msra.mxu0 0.0
    %261 = vmatpush.msra.mxu0 0.0
    %262 = vmatpush.msra.mxu0 0.0
    %263 = vmatpush.msra.mxu0 0.0
    %264 = vmatpush.msra.mxu0 0.0
    %265 = vmatpush.msra.mxu0 0.0
    %266 = vmatpush.msra.mxu0 0.0
    %267 = vmatpush.msra.mxu0 0.0
    %268 = vmatpush.msra.mxu0 0.0
    %269 = vmatpush.msra.mxu0 0.0
    %270 = vmatpush.msra.mxu0 0.0
    %271 = vmatpush.msra.mxu0 0.0
    %272 = vmatpush.msra.mxu0 0.0
    %273 = vmatpush.msra.mxu0 %v217
    %274 = vmatmul.f32.gmra.mxu0 %v230
    %v275 = vpop.f32.mrf.mxu0
    %v276 = vadd.f32 %v221, %v275
    %277 = vmatmul.f32.gmra.mxu0 %v233
    %v278 = vpop.f32.mrf.mxu0
    %v279 = vadd.f32 %v226, %v278
    %280 = vdwg.mxu0
    %281 = vst [vmem:[#allocation5] sm:$0xff] %v253
    %282 = vst [vmem:[#allocation5 + $0x8] sm:$0xff] %v276
    %283 = vst [vmem:[#allocation5 + $0x10] sm:$0xff] %v256
    %284 = vst [vmem:[#allocation5 + $0x18] sm:$0xff] %v279
    // Predicated region
    $region30: #{tpu_custom_call.1} parent=1 // pred_check
      _
    $region31: #{tpu_custom_call.1} parent=1 // pred_check_branch
      %286 = sbr.rel (0) target = $region33
    $region32: #{tpu_custom_call.1} parent=1 // pred_region
      %288 = vsyncadd [#allocation4], 0
      %s289 = sshll.u32 [#allocation5], 4
      %s290 = int_to_ptr.vmem [resolvable:$true] %s289
      %s291 = sshll.u32 %s6, 4
      %s292 = int_to_ptr.hbm [resolvable:$true] %s291
      %297 = dma.vmem_to_hbm [thread:$0]  %s290, 512, %s292, [#allocation4], 256, 256, 16
    $region33: #{tpu_custom_call.1} parent=1 // pred_fallthru
      _
    // Predicated region
    $region34: #{tpu_custom_call.1} parent=1 // pred_check
      _
    $region35: #{tpu_custom_call.1} parent=1 // pred_check_branch
      %299 = sbr.rel (0) target = $region37
    $region36: #{tpu_custom_call.1} parent=1 // pred_region
      %301 = dma.done [#allocation4], 512
    $region37: #{tpu_custom_call.1} parent=1 // pred_fallthru
      _
    %302 = vsyncpa [#allocation3], 1
    %303 = vsyncpa [#allocation4], 1

</llo_original>
